<compile_context>
chip_gen: v6e
topology: v6e:2x2x1
jax: 0.10.0
libtpu: 0.0.40
codegen_flags: <defaults>
</compile_context>

<pallas_src>
import functools
import numpy as np
import jax
import jax.numpy as jnp
from jax import lax
from jax.experimental import pallas as pl
from jax.experimental.pallas import tpu as pltpu

_LANE = 128


# ----------------------------------------------------------------------------
# Parameter ("buffer") construction — deterministic, matches torch init exactly
# ----------------------------------------------------------------------------
def make_positional_encoding(latent_dim: int, window_size: int) -> jnp.ndarray:
    position = np.arange(window_size, dtype=np.float32)[:, None]                  # (W, 1)
    div_term = np.exp(
        np.arange(0, latent_dim, 2, dtype=np.float32) * (-np.log(10000.0) / latent_dim)
    )                                                                              # (D/2,)
    pe = np.zeros((window_size, latent_dim), dtype=np.float32)
    pe[:, 0::2] = np.sin(position * div_term)
    pe[:, 1::2] = np.cos(position * div_term)
    return jnp.asarray(pe[None])                                                   # (1, W, D)


# ----------------------------------------------------------------------------
# Kernels (operate on the flattened lane-dense 2-D view)
# ----------------------------------------------------------------------------
def _pe_add_kernel(x_ref, pe_ref, o_ref):
    # x_ref: (Bt, C), pe_ref: (1, C) broadcast over the batch rows of the tile.
    o_ref[...] = (x_ref[...] + pe_ref[...]).astype(o_ref.dtype)


def _pe_add_dropout_kernel(seed_ref, x_ref, pe_ref, o_ref, *, threshold, scale):
    # Fused add + inverted dropout.  keep iff hash_bits >= threshold, P(keep)=1-p.
    y = x_ref[...] + pe_ref[...]                       # compute in x dtype
    shape = y.shape

    step = pl.program_id(0) * pl.num_programs(1) + pl.program_id(1)
    seed = seed_ref[0]

    # Counter-based hash PRNG (portable: no pltpu.prng_* primitives).
    rows = lax.broadcasted_iota(jnp.uint32, shape, 0)
    cols = lax.broadcasted_iota(jnp.uint32, shape, 1)
    h = cols * jnp.uint32(0x9E3779B1)
    h = h ^ (rows * jnp.uint32(0x85EBCA77))
    h = h + (step.astype(jnp.uint32) * jnp.uint32(0xC2B2AE3D))
    h = h ^ (seed.astype(jnp.uint32) * jnp.uint32(0x27D4EB2F))
    # murmur3 fmix32 finalizer for avalanche.
    h = h ^ (h >> 16)
    h = h * jnp.uint32(0x85EBCA6B)
    h = h ^ (h >> 13)
    h = h * jnp.uint32(0xC2B2AE35)
    h = h ^ (h >> 16)

    keep = h >= jnp.uint32(threshold)
    o_ref[...] = jnp.where(keep, y * scale, 0.0).astype(o_ref.dtype)


# ----------------------------------------------------------------------------
# Tiling helpers
# ----------------------------------------------------------------------------
def _hw_tile_params():
    """(target_x_tile_bytes, vmem_limit_cap) dispatched on TPU generation."""
    vmem_cap = 128 << 20
    try:
        dev = jax.devices()[0]
        if dev.platform == "tpu":
            try:
                vmem_cap = int(pltpu.get_tpu_info().vmem_capacity_bytes)
            except Exception:
                vmem_cap = 128 << 20
    except Exception:
        pass
    if vmem_cap <= (64 << 20):          # v7x-class: 64 MiB physical VMEM per TC
        return 6 << 20, 48 << 20
    return 8 << 20, 96 << 20            # v5e / v6e: 128 MiB VMEM


def _choose_tiles(B, F, itemsize, target_tile_bytes):
    # Native sublane tile for the dtype: 8 rows f32, 16 rows bf16, 32 rows int8.
    min_sublane = max(8, 32 // itemsize)
    Bt = B if B <= min_sublane else min_sublane
    max_cols = max(_LANE, (target_tile_bytes // (Bt * itemsize)) // _LANE * _LANE)
    C = F if F <= max_cols else max_cols                 # C == F or C % 128 == 0
    n_s = pl.cdiv(F, C)
    n_b = pl.cdiv(B, Bt)
    return Bt, C, n_s, n_b


# ----------------------------------------------------------------------------
# Small-input jnp fast path (XLA fuses this better than a standalone pallas_call)
# ----------------------------------------------------------------------------
def _jnp_forward(x, pe, dropout_p, training, seed):
    S = x.shape[1]
    y = x + pe[:, :S].astype(x.dtype)
    if (not training) or dropout_p <= 0.0:
        return y
    if dropout_p >= 1.0:
        return jnp.zeros_like(x)
    keep = jax.random.bernoulli(jax.random.PRNGKey(seed), 1.0 - float(dropout_p), y.shape)
    return jnp.where(keep, y * (1.0 / (1.0 - float(dropout_p))), 0.0).astype(x.dtype)


# ----------------------------------------------------------------------------
# Wrapper (equivalent of PositionalEncoding.forward)
# ----------------------------------------------------------------------------
def positional_encoding_forward(x, pe, *, dropout_p=0.1, training=False, seed=0,
                                force_pallas=False):
    """x: (B, S, D); pe: (1, W, D) with W >= S."""
    B, S, D = x.shape
    W = pe.shape[1]
    F = S * D
    itemsize = jnp.dtype(x.dtype).itemsize

    # Tiny tensors: launch overhead dominates; let XLA fuse instead.
    if (not force_pallas) and (B * F * itemsize < (1 << 20)):
        return _jnp_forward(x, pe, dropout_p, training, seed)

    if training and dropout_p >= 1.0:
        # torch drops everything when p == 1 (1/(1-p) would be inf) -> all zeros.
        return jnp.zeros_like(x)

    target_tile_bytes, vmem_cap_limit = _hw_tile_params()
    Bt, C, n_s, n_b = _choose_tiles(B, F, itemsize, target_tile_bytes)

    # Lane-dense 2-D views (contiguous reshapes, essentially free under XLA).
    x2 = x.reshape(B, F)
    if (C % _LANE == 0) or (W * D == F):
        # The pe BlockSpec index_map selects the first S*D columns of the full
        # flattened buffer directly (pe[:, :S, :] flattened == pe.flatten()[:S*D]).
        pe2 = pe.reshape(1, W * D)
    else:
        # Single-tile case with F not a multiple of 128: make pe's full width == C
        # so the block shape stays legal (tiny one-time copy).
        pe2 = pe[:, :S, :].reshape(1, F)
    pe2 = pe2.astype(x.dtype)   # compute in the input dtype (no f32 upcast for bf16)

    # VMEM budget: double-buffered x-in + x-out tiles, plus double-buffered pe tile.
    # A (1, C) block is padded to a full sublane tile -> 32 bytes per lane column.
    x_tile = Bt * C * itemsize
    pe_tile = 32 * C
    vmem_limit = int(min(max(4 * x_tile + 2 * pe_tile + (2 << 20), 16 << 20),
                         vmem_cap_limit))

    compiler_params = pltpu.CompilerParams(
        dimension_semantics=("parallel", "parallel"),
        vmem_limit_bytes=vmem_limit,
    )

    if (not training) or dropout_p <= 0.0:
        # Eval mode (or p == 0): dropout is identity -> broadcast add only.
        out2 = pl.pallas_call(
            _pe_add_kernel,
            out_shape=jax.ShapeDtypeStruct((B, F), x.dtype),
            grid_spec=pltpu.PrefetchScalarGridSpec(
                num_scalar_prefetch=0,
                grid=(n_s, n_b),
                in_specs=[pl.BlockSpec((Bt, C), lambda s, b: (b, s)),
                          pl.BlockSpec((1, C), lambda s, b: (0, s))],
                out_specs=pl.BlockSpec((Bt, C), lambda s, b: (b, s)),
            ),
            compiler_params=compiler_params,
        )(x2, pe2)
        return out2.reshape(B, S, D)

    # Training mode: fused add + dropout.
    threshold = min(max(int(round(float(dropout_p) * (2 ** 32))), 0), 2 ** 32 - 1)
    scale = 1.0 / (1.0 - float(dropout_p))
    seed_arr = jnp.asarray([seed], dtype=jnp.int32)
    kern = functools.partial(_pe_add_dropout_kernel, threshold=threshold, scale=scale)

    out2 = pl.pallas_call(
        kern,
        out_shape=jax.ShapeDtypeStruct((B, F), x.dtype),
        grid_spec=pltpu.PrefetchScalarGridSpec(
            num_scalar_prefetch=1,
            grid=(n_s, n_b),
            in_specs=[
                pl.BlockSpec((Bt, C), lambda s, b, seed_ref: (b, s)),
                pl.BlockSpec((1, C), lambda s, b, seed_ref: (0, s)),
            ],
            out_specs=pl.BlockSpec((Bt, C), lambda s, b, seed_ref: (b, s)),
        ),
        compiler_params=compiler_params,
    )(seed_arr, x2, pe2)
    return out2.reshape(B, S, D)


# ----------------------------------------------------------------------------
# Main
# ----------------------------------------------------------------------------
if __name__ == "__main__":
    latent_dim = 32
    window_size = 16
    batch = 2
    seq = 8  # seq <= window_size, exercises the pe[:, :x.size(1)] window

    pe = make_positional_encoding(latent_dim, window_size)  # (1, 16, 32)

    key = jax.random.PRNGKey(0)
    x = jax.random.normal(key, (batch, seq, latent_dim), dtype=jnp.float32)

    ref = np.asarray(x) + np.asarray(pe)[:, :seq]

    # --- Eval-mode forward (dropout == identity), Pallas path forced ---------
    out = positional_encoding_forward(x, pe, dropout_p=0.1, training=False,
                                      force_pallas=True)
    out = jax.block_until_ready(out)
    np.testing.assert_allclose(np.asarray(out), ref, rtol=1e-6, atol=1e-6)

    # --- Small-input jnp fast path agrees too --------------------------------
    out_fast = jax.block_until_ready(
        positional_encoding_forward(x, pe, dropout_p=0.1, training=False))
    np.testing.assert_allclose(np.asarray(out_fast), ref, rtol=1e-6, atol=1e-6)

    # --- Training-mode forward (fused add + dropout), Pallas path forced -----
    p = 0.1
    out_tr = positional_encoding_forward(x, pe, dropout_p=p, training=True,
                                         seed=1234, force_pallas=True)
    out_tr = jax.block_until_ready(out_tr)
    out_tr_np = np.asarray(out_tr)
    assert out_tr_np.shape == (batch, seq, latent_dim)
    assert np.all(np.isfinite(out_tr_np))
    # Every surviving element must equal (x + pe) / (1 - p); dropped elements are 0.
    kept = out_tr_np != 0.0
    assert kept.sum() > 0
    np.testing.assert_allclose(
        out_tr_np[kept], (ref * (1.0 / (1.0 - p)))[kept], rtol=1e-5, atol=1e-5
    )

    print("KERNEL_OK")
</pallas_src>

<mosaic_0001>
module attributes {stable_mosaic.version = 11 : i64} {
  func.func @_pe_add_kernel(%arg0: i32, %arg1: i32, %arg2: memref<2x256xf32, #tpu.memory_space<vmem>>, %arg3: memref<1x256xf32, #tpu.memory_space<vmem>>, %arg4: memref<2x256xf32, #tpu.memory_space<vmem>>) attributes {dimension_semantics = [#tpu.dimension_semantics<parallel>, #tpu.dimension_semantics<parallel>], iteration_bounds = array<i64: 1, 1>, scalar_prefetch = 0 : i64, scratch_operands = 0 : i64, tpu.core_type = #tpu.core_type<tc>, window_params = [{transform_indices = @transform_0, window_bounds = array<i64: 2, 256>}, {transform_indices = @transform_1, window_bounds = array<i64: 1, 256>}, {transform_indices = @transform_2, window_bounds = array<i64: 2, 256>}]} {
    %c0 = arith.constant 0 : index
    %c0_0 = arith.constant 0 : index
    %0 = vector.load %arg2[%c0, %c0_0] : memref<2x256xf32, #tpu.memory_space<vmem>>, vector<2x256xf32>
    %c0_1 = arith.constant 0 : index
    %c0_2 = arith.constant 0 : index
    %1 = vector.load %arg3[%c0_1, %c0_2] : memref<1x256xf32, #tpu.memory_space<vmem>>, vector<1x256xf32>
    %2 = vector.broadcast %1 : vector<1x256xf32> to vector<2x256xf32>
    %3 = arith.addf %0, %2 : vector<2x256xf32>
    %c0_3 = arith.constant 0 : index
    %c0_4 = arith.constant 0 : index
    %4 = vector.load %arg4[%c0_3, %c0_4] : memref<2x256xf32, #tpu.memory_space<vmem>>, vector<2x256xf32>
    tpu.vector_store %arg4[%c0_3, %c0_4], %3 {strides = array<i32>} : memref<2x256xf32, #tpu.memory_space<vmem>>, vector<2x256xf32>,
    return
  }
  func.func @transform_0(%arg0: i32, %arg1: i32) -> (i32, i32) {
    %c0_i32 = arith.constant 0 : i32
    return %arg1, %arg0 : i32, i32
  }
  func.func @transform_1(%arg0: i32, %arg1: i32) -> (i32, i32) {
    %c0_i32 = arith.constant 0 : i32
    %c0_i32_0 = arith.constant 0 : i32
    return %c0_i32, %arg0 : i32, i32
  }
  func.func @transform_2(%arg0: i32, %arg1: i32) -> (i32, i32) {
    %c0_i32 = arith.constant 0 : i32
    return %arg1, %arg0 : i32, i32
  }
}

</mosaic_0001>

<llo_original>
// kernel: tpu_custom_call.1
$region0: #{tpu_custom_call.1}
  #allocation0 [shape = 'u32[]', space=smem, size = 0x4, offset = 0x4, fixed_abs, tag = 'smem constant byte address 0x4 - core index']
  #allocation1 [shape = 'u32[144,128]{1,0:T(1,128)}', space=vmem, size = 0x12000, scoped, tag = 'internal scratch']
  %s0 = inlined_call_operand.hbm [shape: f32[2,256], index: 0, kind: input, shape index: {}]
  %s1 = inlined_call_operand.hbm [shape: f32[1,512], index: 1, kind: input, shape index: {}]
  %s2 = inlined_call_operand.hbm [shape: f32[2,256], index: 2, kind: output, shape index: {}]
  %s3 = sld [smem:[#allocation0]]
  $region26: #{tpu_custom_call.1} parent=0
    _
  %s5 = ssub.s32 1, %s3
  %s6 = scalar_select 0, %s5, %s3
  $region1: #{tpu_custom_call.1} parent=0
    #allocation2 [shape = 'u8[2048]{0}', space=vmem, size = 0x800, scoped, tag = 'input window, operand 0, single buffered']
    #allocation3 [shape = 's32[1]{0}', space=sflag, size = 0x4, scoped, tag = 'scoped memory for tpu_custom_call.1']
    #allocation4 [shape = 's32[1]{0}', space=sflag, size = 0x4, scoped, tag = 'scoped memory for tpu_custom_call.1']
    #allocation5 [shape = 'u8[1024]{0}', space=vmem, size = 0x400, scoped, tag = 'input window, operand 1, single buffered']
    #allocation6 [shape = 's32[1]{0}', space=sflag, size = 0x4, scoped, tag = 'scoped memory for tpu_custom_call.1']
    #allocation7 [shape = 'u8[2048]{0}', space=vmem, size = 0x800, scoped, tag = 'output window, operand 0, single buffered']
    %7 = vsyncpa [#allocation3], 0
    %8 = vsyncpa [#allocation6], 0
    %9 = vsyncpa [#allocation4], 0
    // Predicated region
    $region2: #{tpu_custom_call.1} parent=1 // pred_check
      _
    $region3: #{tpu_custom_call.1} parent=1 // pred_check_branch
      %11 = sbr.rel (0) target = $region5
    $region4: #{tpu_custom_call.1} parent=1 // pred_region
      %s13 = ssub.s32 64, 64
      %14 = vsyncadd [#allocation3], %s13
      %s16 = sshll.u32 [#allocation2], 4
      %s17 = int_to_ptr.vmem [resolvable:$true] %s16
      %19 = dma.hbm_to_vmem [thread:$0]  %s0, 64, %s17, [#allocation3]
    $region5: #{tpu_custom_call.1} parent=1 // pred_fallthru
      _
    // Predicated region
    $region6: #{tpu_custom_call.1} parent=1 // pred_check
      _
    $region7: #{tpu_custom_call.1} parent=1 // pred_check_branch
      %21 = sbr.rel (0) target = $region9
    $region8: #{tpu_custom_call.1} parent=1 // pred_region
      %s23 = ssub.s32 32, 32
      %24 = vsyncadd [#allocation6], %s23
      %s26 = sshll.u32 [#allocation5], 4
      %s27 = int_to_ptr.vmem [resolvable:$true] %s26
      %29 = dma.hbm_to_vmem [thread:$0]  %s1, 32, %s27, [#allocation6]
    $region9: #{tpu_custom_call.1} parent=1 // pred_fallthru
      _
    // Predicated region
    $region10: #{tpu_custom_call.1} parent=1 // pred_check
      _
    $region11: #{tpu_custom_call.1} parent=1 // pred_check_branch
      %31 = sbr.rel (0) target = $region13
    $region12: #{tpu_custom_call.1} parent=1 // pred_region
      %32 = dma.done [#allocation3], 64
    $region13: #{tpu_custom_call.1} parent=1 // pred_fallthru
      _
    // Predicated region
    $region14: #{tpu_custom_call.1} parent=1 // pred_check
      _
    $region15: #{tpu_custom_call.1} parent=1 // pred_check_branch
      %34 = sbr.rel (0) target = $region17
    $region16: #{tpu_custom_call.1} parent=1 // pred_region
      %35 = dma.done [#allocation6], 32
    $region17: #{tpu_custom_call.1} parent=1 // pred_fallthru
      _
    %v36 = vld [vmem:[#allocation2] sm:$0xf]
    %v37 = vld [vmem:[#allocation5] sm:$0x3]
    %v39 = vlaneseq
    %v40 = vshrl.u32 %v39, 7
    %v41 = vsub.s32 0, %v40
    %v42 = vrot.slane %v37, %v41
    %v43 = vlaneseq
    %v44 = vshrl.u32 %v43, 7
    %v45 = vsub.s32 1, %v44
    %v46 = vrot.slane %v37, %v45
    %v47 = vcombine.low %v42, %v46
    %v49 = vunpack.c.l.s4 1983009808
    %v50 = vunpack.c.0.s8 %v49
    %v51 = vlaneseq
    %v52 = vshrl.u32 %v51, 7
    %v53 = vsub.s32 %v50, %v52
    %v54 = vrot.slane %v47, %v53
    %v56 = vadd.f32 %v36, %v54
    %57 = vst [vmem:[#allocation7] sm:$0xf] %v56
    // Predicated region
    $region18: #{tpu_custom_call.1} parent=1 // pred_check
      _
    $region19: #{tpu_custom_call.1} parent=1 // pred_check_branch
      %59 = sbr.rel (0) target = $region21
    $region20: #{tpu_custom_call.1} parent=1 // pred_region
      %s61 = ssub.s32 64, 64
      %62 = vsyncadd [#allocation4], %s61
      %s64 = sshll.u32 [#allocation7], 4
      %s65 = int_to_ptr.vmem [resolvable:$true] %s64
      %67 = dma.vmem_to_hbm [thread:$0]  %s65, 64, %s2, [#allocation4]
    $region21: #{tpu_custom_call.1} parent=1 // pred_fallthru
      _
    // Predicated region
    $region22: #{tpu_custom_call.1} parent=1 // pred_check
      _
    $region23: #{tpu_custom_call.1} parent=1 // pred_check_branch
      %69 = sbr.rel (0) target = $region25
    $region24: #{tpu_custom_call.1} parent=1 // pred_region
      %70 = dma.done [#allocation4], 64
    $region25: #{tpu_custom_call.1} parent=1 // pred_fallthru
      _
    %71 = vsyncpa [#allocation3], 1
    %72 = vsyncpa [#allocation6], 1
    %73 = vsyncpa [#allocation4], 1

</llo_original>
